<compile_context>
chip_gen: v6e
topology: v6e:2x2x1
jax: 0.10.0
libtpu: 0.0.40
codegen_flags: <defaults>
</compile_context>

<pallas_src>
import functools

import jax
import jax.numpy as jnp
from jax.experimental import pallas as pl
from jax.experimental.pallas import tpu as pltpu


_LANES = 128


def _round_up(c, m=_LANES):
    return ((c + m - 1) // m) * m


def _sum_bytes(arrs):
    return sum(int(a.nbytes) for a in arrs)


def _vmem_limit(live_bytes):
    # Derived from actual buffer sizes; clamped so the same setting is safe on v7x
    # (64 MiB physical VMEM) as well as v5e/v6e (128 MiB).
    return int(min(max(live_bytes + (8 << 20), 32 << 20), 64 << 20))


def _full_spec(shape):
    nd = len(shape)
    return pl.BlockSpec(shape, lambda i, _nd=nd: (0,) * _nd)


# ----------------------------------------------------------------------------- kernels

def _spatial_block_kernel(x_ref, w3_ref, bdw_ref, wpw_ref, bpw_ref, o_ref, xp_ref, *, stride):
    """One fused MobileOneBlock (all branches reparam-folded) for one image:
         depthwise 3x3 (center tap holds dw1x1 + identity BN) -> ReLU
         pointwise 1x1 matmul (identity BN folded as diagonal) -> ReLU
       computed directly at the strided output resolution.
    """
    _, H, W, Cin = x_ref.shape
    Ho = (H - 1) // stride + 1
    Wo = (W - 1) // stride + 1
    Cout = wpw_ref.shape[1]
    Hp, Wp, _ = xp_ref.shape

    # 1-px halo built in VMEM: zero ONLY the border strips, then write the interior once
    # (no full-buffer zero fill followed by an overwrite).
    xp_ref[0:1, :, :] = jnp.zeros((1, Wp, Cin), jnp.float32)
    xp_ref[1 + H:Hp, :, :] = jnp.zeros((Hp - 1 - H, Wp, Cin), jnp.float32)
    xp_ref[1:1 + H, 0:1, :] = jnp.zeros((H, 1, Cin), jnp.float32)
    xp_ref[1:1 + H, 1 + W:Wp, :] = jnp.zeros((H, Wp - 1 - W, Cin), jnp.float32)
    xp_ref[1:1 + H, 1:1 + W, :] = x_ref[0].astype(jnp.float32)

    # depthwise 3x3, evaluated directly at output resolution (f32 VPU math for v5e).
    w3 = w3_ref[...]                                     # (9, Cin) f32, BN-folded taps
    acc = jnp.zeros((Ho, Wo, Cin), jnp.float32)
    t = 0
    for dy in range(3):
        for dx in range(3):
            if stride == 1 or (Ho == 1 and Wo == 1):
                win = xp_ref[dy:dy + Ho, dx:dx + Wo, :]
            else:
                win = xp_ref[pl.ds(dy, Ho, stride=stride),
                             pl.ds(dx, Wo, stride=stride), :]
            acc = acc + win * w3[t].reshape(1, 1, Cin)
            t += 1
    dw = jnp.maximum(acc + bdw_ref[...].reshape(1, 1, Cin), 0.0)

    # pointwise 1x1 as an MXU matmul (bf16 operands, f32 accumulation) + bias + ReLU.
    lhs = dw.reshape(Ho * Wo, Cin).astype(jnp.bfloat16)
    y = jnp.dot(lhs, wpw_ref[...], preferred_element_type=jnp.float32)
    y = jnp.maximum(y + bpw_ref[...], 0.0)
    o_ref[0] = y.reshape(Ho, Wo, Cout).astype(o_ref.dtype)


def _tail_kernel(*refs, n_blocks):
    """All remaining MobileOneBlocks once the feature map is 1x1, plus the classifier head,
    fused into one kernel over the WHOLE batch (matmul M = N, every intermediate stays in
    VMEM/vregs, each weight is DMA'd exactly once)."""
    x_ref = refs[0]
    blk = refs[1:1 + 4 * n_blocks]
    hw_ref = refs[1 + 4 * n_blocks]
    hb_ref = refs[2 + 4 * n_blocks]
    o_ref = refs[-1]

    x = x_ref[...].astype(jnp.float32)                       # (N, C)
    for b in range(n_blocks):
        w3c_ref, bdw_ref, wpw_ref, bpw_ref = blk[4 * b:4 * b + 4]
        # depthwise 3x3 on a 1x1 map == center tap only (other 8 taps read zero padding).
        h = jnp.maximum(x * w3c_ref[...] + bdw_ref[...], 0.0)
        x = jnp.maximum(
            jnp.dot(h.astype(jnp.bfloat16), wpw_ref[...],
                    preferred_element_type=jnp.float32) + bpw_ref[...], 0.0)
    # AdaptiveAvgPool2d(1) on a 1x1 map is the identity; fused 1x1 classifier conv (bias).
    o_ref[...] = jnp.dot(x.astype(jnp.bfloat16), hw_ref[...],
                         preferred_element_type=jnp.float32) + hb_ref[...]


# ----------------------------------------------------------------------------- wrappers

def _run_spatial_block(x, p):
    """x: (N, H, W, Cp_in) bf16 NHWC -> (N, Ho, Wo, Cp_out) bf16."""
    N, H, W, Cin = x.shape
    S = p["stride"]
    Ho = (H - 1) // S + 1
    Wo = (W - 1) // S + 1
    Cout = p["wpw"].shape[1]
    Hp, Wp = (H + 2, W + 2) if S == 1 else (S * Ho + 2, S * Wo + 2)

    kern = functools.partial(_spatial_block_kernel, stride=S)
    weights = [p["w3"], p["b_dw"], p["wpw"], p["b_pw"]]
    in_specs = ([pl.BlockSpec((1, H, W, Cin), lambda n: (n, 0, 0, 0))]
                + [_full_spec(w.shape) for w in weights])
    out_spec = pl.BlockSpec((1, Ho, Wo, Cout), lambda n: (n, 0, 0, 0))
    out_shape = jax.ShapeDtypeStruct((N, Ho, Wo, Cout), jnp.bfloat16)

    # double-buffered per-step blocks + weights + f32 halo scratch
    live = 2 * ((H * W * Cin + Ho * Wo * Cout) * 2 + _sum_bytes(weights)) + Hp * Wp * Cin * 4
    return pl.pallas_call(
        kern,
        grid=(N,),
        in_specs=in_specs,
        out_specs=out_spec,
        out_shape=out_shape,
        scratch_shapes=[pltpu.VMEM((Hp, Wp, Cin), jnp.float32)],
        compiler_params=pltpu.CompilerParams(
            dimension_semantics=("parallel",),          # batch across TCs on v7x
            vmem_limit_bytes=_vmem_limit(live)),
    )(x, *weights)


def _run_tail(x, tail_blocks, head_w, head_b):
    """x: (N, 1, 1, Cp) bf16 -> (N, 1280) f32 (all 1x1 blocks + head fused, whole batch)."""
    N, H, W, Cp = x.shape
    assert H == 1 and W == 1
    x2 = x.reshape(N, Cp)

    args = [x2]
    for p in tail_blocks:
        args += [p["w3c"], p["b_dw"], p["wpw"], p["b_pw"]]
    args += [head_w, head_b]
    n_out = head_w.shape[1]

    kern = functools.partial(_tail_kernel, n_blocks=len(tail_blocks))
    live = 2 * _sum_bytes(args) + 2 * N * n_out * 4
    return pl.pallas_call(
        kern,
        grid=(1,),
        in_specs=[_full_spec(a.shape) for a in args],
        out_specs=pl.BlockSpec((N, n_out), lambda i: (0, 0)),
        out_shape=jax.ShapeDtypeStruct((N, n_out), jnp.float32),
        compiler_params=pltpu.CompilerParams(
            dimension_semantics=("arbitrary",),
            vmem_limit_bytes=_vmem_limit(live)),
    )(*args)


def mobileone_forward(x_nchw, params):
    blocks = params["blocks"]
    x = jnp.transpose(x_nchw, (0, 2, 3, 1)).astype(jnp.float32)      # NCHW -> NHWC
    cin = x.shape[-1]
    x = jnp.pad(x, ((0, 0), (0, 0), (0, 0), (0, _round_up(cin) - cin)))
    x = x.astype(jnp.bfloat16)

    # Phase 1: blocks whose input still has spatial extent -> one fused call each.
    i = 0
    while i < len(blocks) and (x.shape[1] > 1 or x.shape[2] > 1):
        x = _run_spatial_block(x, blocks[i])
        i += 1

    # Phase 2: once the map is 1x1, fuse every remaining block + the classifier head
    # into a single pallas_call over the whole batch.
    assert x.shape[1] == 1 and x.shape[2] == 1, "input too large for the fused tail"
    out = _run_tail(x, blocks[i:], params["head_w"], params["head_b"])   # (N, 1280) f32
    return out.reshape(out.shape[0], -1, 1, 1).astype(jnp.float32)       # (N, 1280, 1, 1)


# ----------------------------------------------------------------------------- parameters

def _fold_bn(gamma, beta, mean, var, eps=1e-5):
    scale = gamma / jnp.sqrt(var + eps)
    return scale, beta - mean * scale


def _bn_params(key, c):
    k1, k2, k3, k4 = jax.random.split(key, 4)
    gamma = 1.0 + 0.1 * jax.random.normal(k1, (c,), jnp.float32)
    beta = 0.05 * jax.random.normal(k2, (c,), jnp.float32)
    mean = 0.05 * jax.random.normal(k3, (c,), jnp.float32)
    var = 1.0 + 0.1 * jax.random.uniform(k4, (c,), jnp.float32)
    return _fold_bn(gamma, beta, mean, var)


def _pad_lanes(a, axis, target):
    pad = [(0, 0)] * a.ndim
    pad[axis] = (0, target - a.shape[axis])
    return jnp.pad(a, pad)


def init_block_params(key, cin, cout, stride):
    """Eval-mode MobileOneBlock params, reparam-folded (exact) into one 3x3 depthwise conv
    and one pointwise matmul, then zero-padded so channel counts are lane (128) aligned."""
    has_id = (stride == 1 and cin == cout)
    keys = jax.random.split(key, 8)
    # depthwise 3x3 (groups=cin, bias=False) + BN -> folded taps
    w3 = 0.2 * jax.random.normal(keys[0], (9, cin), jnp.float32)
    s3, b3 = _bn_params(keys[1], cin)
    w3 = w3 * s3[None, :]
    # depthwise 1x1 scale branch + BN -> folds onto the center tap
    w1 = 0.2 * jax.random.normal(keys[2], (cin,), jnp.float32)
    s1, b1 = _bn_params(keys[3], cin)
    w3 = w3.at[4].add(w1 * s1)
    b_dw = b3 + b1
    # pointwise 1x1 (bias=False) + BN -> (cin, cout) matmul weight
    wpw = jax.random.normal(keys[5], (cin, cout), jnp.float32) * (1.0 / cin) ** 0.5
    spw, bpw = _bn_params(keys[6], cout)
    wpw = wpw * spw[None, :]
    b_pw = bpw
    if has_id:
        sid_dw, bid_dw = _bn_params(keys[4], cin)
        w3 = w3.at[4].add(sid_dw)
        b_dw = b_dw + bid_dw
        sid_pw, bid_pw = _bn_params(keys[7], cin)
        wpw = wpw + jnp.diag(sid_pw)
        b_pw = b_pw + bid_pw
    # lane padding: padded weights/biases are zero so padded channels stay exactly 0.
    cin_p, cout_p = _round_up(cin), _round_up(cout)
    w3_p = _pad_lanes(w3, 1, cin_p)
    return dict(
        stride=stride,
        w3=w3_p,
        w3c=w3_p[4:5],                                   # center tap (used by the 1x1 tail)
        b_dw=_pad_lanes(b_dw.reshape(1, cin), 1, cin_p),
        wpw=_pad_lanes(_pad_lanes(wpw, 0, cin_p), 1, cout_p).astype(jnp.bfloat16),
        b_pw=_pad_lanes(b_pw.reshape(1, cout), 1, cout_p),
    )


# (out_channels, stride, num_blocks) -- the last row reproduces the block created from the
# ('adaptive_avg_pool', 1280, 1, 1) cfg entry in the reference code.
_CFG = [(96, 2, 1), (96, 2, 2), (192, 2, 8), (512, 2, 5), (512, 1, 5), (1280, 2, 1), (1280, 1, 1)]


def init_mobileone_params(key):
    blocks = []
    cin = 3
    for (c, s, n) in _CFG:
        for _ in range(n):
            key, sub = jax.random.split(key)
            blocks.append(init_block_params(sub, cin, c, s))
            cin = c
    key, k1, k2 = jax.random.split(key, 3)
    head_w = jax.random.normal(k1, (1280, 1280), jnp.float32) * (1.0 / 1280) ** 0.5
    head_b = 0.05 * jax.random.normal(k2, (1280,), jnp.float32)
    return dict(blocks=blocks,
                head_w=head_w.astype(jnp.bfloat16),       # AdaptiveAvgPool2d(1) + Conv2d(1280,1280,1)
                head_b=head_b.reshape(1, 1280))


# ----------------------------------------------------------------------------- main

if __name__ == "__main__":
    key = jax.random.PRNGKey(0)
    kp, kx = jax.random.split(key)
    params = init_mobileone_params(kp)
    x = jax.random.normal(kx, (2, 3, 16, 16), jnp.float32)   # NCHW, like the PyTorch module
    y = mobileone_forward(x, params)
    y = jax.block_until_ready(y)
    assert y.shape == (2, 1280, 1, 1), y.shape
    assert bool(jnp.all(jnp.isfinite(y)))
    print("KERNEL_OK")
</pallas_src>

<mosaic_0001>
module attributes {stable_mosaic.version = 11 : i64} {
  func.func @_spatial_block_kernel(%arg0: i32, %arg1: memref<1x16x16x128xbf16, #tpu.memory_space<vmem>>, %arg2: memref<9x128xf32, #tpu.memory_space<vmem>>, %arg3: memref<1x128xf32, #tpu.memory_space<vmem>>, %arg4: memref<128x128xbf16, #tpu.memory_space<vmem>>, %arg5: memref<1x128xf32, #tpu.memory_space<vmem>>, %arg6: memref<1x8x8x128xbf16, #tpu.memory_space<vmem>>, %arg7: memref<18x18x128xf32, #tpu.memory_space<vmem>>) attributes {dimension_semantics = [#tpu.dimension_semantics<parallel>], iteration_bounds = array<i64: 2>, scalar_prefetch = 0 : i64, scratch_operands = 1 : i64, tpu.core_type = #tpu.core_type<tc>, window_params = [{transform_indices = @transform_0, window_bounds = array<i64: 1, 16, 16, 128>}, {pipeline_mode = #tpu.pipeline_mode<synchronous>, transform_indices = @transform_1, window_bounds = array<i64: 9, 128>}, {pipeline_mode = #tpu.pipeline_mode<synchronous>, transform_indices = @transform_2, window_bounds = array<i64: 1, 128>}, {pipeline_mode = #tpu.pipeline_mode<synchronous>, transform_indices = @transform_3, window_bounds = array<i64: 128, 128>}, {pipeline_mode = #tpu.pipeline_mode<synchronous>, transform_indices = @transform_4, window_bounds = array<i64: 1, 128>}, {transform_indices = @transform_5, window_bounds = array<i64: 1, 8, 8, 128>}]} {
    %cst = arith.constant 0.000000e+00 : f32
    %0 = vector.broadcast %cst : f32 to vector<1x18x128xf32>
    %c0 = arith.constant 0 : index
    %c0_0 = arith.constant 0 : index
    %c0_1 = arith.constant 0 : index
    %1 = vector.load %arg7[%c0, %c0_0, %c0_1] : memref<18x18x128xf32, #tpu.memory_space<vmem>>, vector<1x18x128xf32>
    tpu.vector_store %arg7[%c0, %c0_0, %c0_1], %0 {strides = array<i32>} : memref<18x18x128xf32, #tpu.memory_space<vmem>>, vector<1x18x128xf32>,
    %cst_2 = arith.constant 0.000000e+00 : f32
    %2 = vector.broadcast %cst_2 : f32 to vector<1x18x128xf32>
    %c17 = arith.constant 17 : index
    %c0_3 = arith.constant 0 : index
    %c0_4 = arith.constant 0 : index
    %3 = vector.load %arg7[%c17, %c0_3, %c0_4] : memref<18x18x128xf32, #tpu.memory_space<vmem>>, vector<1x18x128xf32>
    tpu.vector_store %arg7[%c17, %c0_3, %c0_4], %2 {strides = array<i32>} : memref<18x18x128xf32, #tpu.memory_space<vmem>>, vector<1x18x128xf32>,
    %cst_5 = arith.constant 0.000000e+00 : f32
    %4 = vector.broadcast %cst_5 : f32 to vector<16x1x128xf32>
    %c1 = arith.constant 1 : index
    %c0_6 = arith.constant 0 : index
    %c0_7 = arith.constant 0 : index
    %5 = vector.load %arg7[%c1, %c0_6, %c0_7] : memref<18x18x128xf32, #tpu.memory_space<vmem>>, vector<16x1x128xf32>
    tpu.vector_store %arg7[%c1, %c0_6, %c0_7], %4 {strides = array<i32>} : memref<18x18x128xf32, #tpu.memory_space<vmem>>, vector<16x1x128xf32>,
    %cst_8 = arith.constant 0.000000e+00 : f32
    %6 = vector.broadcast %cst_8 : f32 to vector<16x1x128xf32>
    %c1_9 = arith.constant 1 : index
    %c17_10 = arith.constant 17 : index
    %c0_11 = arith.constant 0 : index
    %7 = vector.load %arg7[%c1_9, %c17_10, %c0_11] : memref<18x18x128xf32, #tpu.memory_space<vmem>>, vector<16x1x128xf32>
    tpu.vector_store %arg7[%c1_9, %c17_10, %c0_11], %6 {strides = array<i32>} : memref<18x18x128xf32, #tpu.memory_space<vmem>>, vector<16x1x128xf32>,
    %c0_12 = arith.constant 0 : index
    %c0_13 = arith.constant 0 : index
    %c0_14 = arith.constant 0 : index
    %c0_15 = arith.constant 0 : index
    %8 = vector.load %arg1[%c0_12, %c0_13, %c0_14, %c0_15] : memref<1x16x16x128xbf16, #tpu.memory_space<vmem>>, vector<1x16x16x128xbf16>
    %9 = vector.shape_cast %8 : vector<1x16x16x128xbf16> to vector<16x16x128xbf16>
    %10 = arith.extf %9 : vector<16x16x128xbf16> to vector<16x16x128xf32>
    %c1_16 = arith.constant 1 : index
    %c1_17 = arith.constant 1 : index
    %c0_18 = arith.constant 0 : index
    %11 = vector.load %arg7[%c1_16, %c1_17, %c0_18] : memref<18x18x128xf32, #tpu.memory_space<vmem>>, vector<16x16x128xf32>
    tpu.vector_store %arg7[%c1_16, %c1_17, %c0_18], %10 {strides = array<i32>} : memref<18x18x128xf32, #tpu.memory_space<vmem>>, vector<16x16x128xf32>,
    %c0_19 = arith.constant 0 : index
    %c0_20 = arith.constant 0 : index
    %12 = vector.load %arg2[%c0_19, %c0_20] : memref<9x128xf32, #tpu.memory_space<vmem>>, vector<9x128xf32>
    %cst_21 = arith.constant 0.000000e+00 : f32
    %13 = vector.broadcast %cst_21 : f32 to vector<8x8x128xf32>
    %c0_22 = arith.constant 0 : index
    %c0_23 = arith.constant 0 : index
    %c0_24 = arith.constant 0 : index
    %14 = tpu.strided_load %arg7[%c0_22, %c0_23, %c0_24] {strides = array<i32: 2, 2, 1>} : memref<18x18x128xf32, #tpu.memory_space<vmem>>, vector<8x8x128xf32>
    %15 = vector.extract_strided_slice %12 {offsets = [0, 0], sizes = [1, 128], strides = [1, 1]} : vector<9x128xf32> to vector<1x128xf32>
    %16 = vector.shape_cast %15 : vector<1x128xf32> to vector<128xf32>
    %17 = vector.shape_cast %16 : vector<128xf32> to vector<1x1x128xf32>
    %18 = vector.broadcast %17 : vector<1x1x128xf32> to vector<8x8x128xf32>
    %19 = arith.mulf %14, %18 : vector<8x8x128xf32>
    %20 = arith.addf %13, %19 : vector<8x8x128xf32>
    %c0_25 = arith.constant 0 : index
    %c1_26 = arith.constant 1 : index
    %c0_27 = arith.constant 0 : index
    %21 = tpu.strided_load %arg7[%c0_25, %c1_26, %c0_27] {strides = array<i32: 2, 2, 1>} : memref<18x18x128xf32, #tpu.memory_space<vmem>>, vector<8x8x128xf32>
    %22 = vector.extract_strided_slice %12 {offsets = [1, 0], sizes = [1, 128], strides = [1, 1]} : vector<9x128xf32> to vector<1x128xf32>
    %23 = vector.shape_cast %22 : vector<1x128xf32> to vector<128xf32>
    %24 = vector.shape_cast %23 : vector<128xf32> to vector<1x1x128xf32>
    %25 = vector.broadcast %24 : vector<1x1x128xf32> to vector<8x8x128xf32>
    %26 = arith.mulf %21, %25 : vector<8x8x128xf32>
    %27 = arith.addf %20, %26 : vector<8x8x128xf32>
    %c0_28 = arith.constant 0 : index
    %c2 = arith.constant 2 : index
    %c0_29 = arith.constant 0 : index
    %28 = tpu.strided_load %arg7[%c0_28, %c2, %c0_29] {strides = array<i32: 2, 2, 1>} : memref<18x18x128xf32, #tpu.memory_space<vmem>>, vector<8x8x128xf32>
    %29 = vector.extract_strided_slice %12 {offsets = [2, 0], sizes = [1, 128], strides = [1, 1]} : vector<9x128xf32> to vector<1x128xf32>
    %30 = vector.shape_cast %29 : vector<1x128xf32> to vector<128xf32>
    %31 = vector.shape_cast %30 : vector<128xf32> to vector<1x1x128xf32>
    %32 = vector.broadcast %31 : vector<1x1x128xf32> to vector<8x8x128xf32>
    %33 = arith.mulf %28, %32 : vector<8x8x128xf32>
    %34 = arith.addf %27, %33 : vector<8x8x128xf32>
    %c1_30 = arith.constant 1 : index
    %c0_31 = arith.constant 0 : index
    %c0_32 = arith.constant 0 : index
    %35 = tpu.strided_load %arg7[%c1_30, %c0_31, %c0_32] {strides = array<i32: 2, 2, 1>} : memref<18x18x128xf32, #tpu.memory_space<vmem>>, vector<8x8x128xf32>
    %36 = vector.extract_strided_slice %12 {offsets = [3, 0], sizes = [1, 128], strides = [1, 1]} : vector<9x128xf32> to vector<1x128xf32>
    %37 = vector.shape_cast %36 : vector<1x128xf32> to vector<128xf32>
    %38 = vector.shape_cast %37 : vector<128xf32> to vector<1x1x128xf32>
    %39 = vector.broadcast %38 : vector<1x1x128xf32> to vector<8x8x128xf32>
    %40 = arith.mulf %35, %39 : vector<8x8x128xf32>
    %41 = arith.addf %34, %40 : vector<8x8x128xf32>
    %c1_33 = arith.constant 1 : index
    %c1_34 = arith.constant 1 : index
    %c0_35 = arith.constant 0 : index
    %42 = tpu.strided_load %arg7[%c1_33, %c1_34, %c0_35] {strides = array<i32: 2, 2, 1>} : memref<18x18x128xf32, #tpu.memory_space<vmem>>, vector<8x8x128xf32>
    %43 = vector.extract_strided_slice %12 {offsets = [4, 0], sizes = [1, 128], strides = [1, 1]} : vector<9x128xf32> to vector<1x128xf32>
    %44 = vector.shape_cast %43 : vector<1x128xf32> to vector<128xf32>
    %45 = vector.shape_cast %44 : vector<128xf32> to vector<1x1x128xf32>
    %46 = vector.broadcast %45 : vector<1x1x128xf32> to vector<8x8x128xf32>
    %47 = arith.mulf %42, %46 : vector<8x8x128xf32>
    %48 = arith.addf %41, %47 : vector<8x8x128xf32>
    %c1_36 = arith.constant 1 : index
    %c2_37 = arith.constant 2 : index
    %c0_38 = arith.constant 0 : index
    %49 = tpu.strided_load %arg7[%c1_36, %c2_37, %c0_38] {strides = array<i32: 2, 2, 1>} : memref<18x18x128xf32, #tpu.memory_space<vmem>>, vector<8x8x128xf32>
    %50 = vector.extract_strided_slice %12 {offsets = [5, 0], sizes = [1, 128], strides = [1, 1]} : vector<9x128xf32> to vector<1x128xf32>
    %51 = vector.shape_cast %50 : vector<1x128xf32> to vector<128xf32>
    %52 = vector.shape_cast %51 : vector<128xf32> to vector<1x1x128xf32>
    %53 = vector.broadcast %52 : vector<1x1x128xf32> to vector<8x8x128xf32>
    %54 = arith.mulf %49, %53 : vector<8x8x128xf32>
    %55 = arith.addf %48, %54 : vector<8x8x128xf32>
    %c2_39 = arith.constant 2 : index
    %c0_40 = arith.constant 0 : index
    %c0_41 = arith.constant 0 : index
    %56 = tpu.strided_load %arg7[%c2_39, %c0_40, %c0_41] {strides = array<i32: 2, 2, 1>} : memref<18x18x128xf32, #tpu.memory_space<vmem>>, vector<8x8x128xf32>
    %57 = vector.extract_strided_slice %12 {offsets = [6, 0], sizes = [1, 128], strides = [1, 1]} : vector<9x128xf32> to vector<1x128xf32>
    %58 = vector.shape_cast %57 : vector<1x128xf32> to vector<128xf32>
    %59 = vector.shape_cast %58 : vector<128xf32> to vector<1x1x128xf32>
    %60 = vector.broadcast %59 : vector<1x1x128xf32> to vector<8x8x128xf32>
    %61 = arith.mulf %56, %60 : vector<8x8x128xf32>
    %62 = arith.addf %55, %61 : vector<8x8x128xf32>
    %c2_42 = arith.constant 2 : index
    %c1_43 = arith.constant 1 : index
    %c0_44 = arith.constant 0 : index
    %63 = tpu.strided_load %arg7[%c2_42, %c1_43, %c0_44] {strides = array<i32: 2, 2, 1>} : memref<18x18x128xf32, #tpu.memory_space<vmem>>, vector<8x8x128xf32>
    %64 = vector.extract_strided_slice %12 {offsets = [7, 0], sizes = [1, 128], strides = [1, 1]} : vector<9x128xf32> to vector<1x128xf32>
    %65 = vector.shape_cast %64 : vector<1x128xf32> to vector<128xf32>
    %66 = vector.shape_cast %65 : vector<128xf32> to vector<1x1x128xf32>
    %67 = vector.broadcast %66 : vector<1x1x128xf32> to vector<8x8x128xf32>
    %68 = arith.mulf %63, %67 : vector<8x8x128xf32>
    %69 = arith.addf %62, %68 : vector<8x8x128xf32>
    %c2_45 = arith.constant 2 : index
    %c2_46 = arith.constant 2 : index
    %c0_47 = arith.constant 0 : index
    %70 = tpu.strided_load %arg7[%c2_45, %c2_46, %c0_47] {strides = array<i32: 2, 2, 1>} : memref<18x18x128xf32, #tpu.memory_space<vmem>>, vector<8x8x128xf32>
    %71 = vector.extract_strided_slice %12 {offsets = [8, 0], sizes = [1, 128], strides = [1, 1]} : vector<9x128xf32> to vector<1x128xf32>
    %72 = vector.shape_cast %71 : vector<1x128xf32> to vector<128xf32>
    %73 = vector.shape_cast %72 : vector<128xf32> to vector<1x1x128xf32>
    %74 = vector.broadcast %73 : vector<1x1x128xf32> to vector<8x8x128xf32>
    %75 = arith.mulf %70, %74 : vector<8x8x128xf32>
    %76 = arith.addf %69, %75 : vector<8x8x128xf32>
    %c0_48 = arith.constant 0 : index
    %c0_49 = arith.constant 0 : index
    %77 = vector.load %arg3[%c0_48, %c0_49] : memref<1x128xf32, #tpu.memory_space<vmem>>, vector<1x128xf32>
    %78 = vector.shape_cast %77 : vector<1x128xf32> to vector<1x1x128xf32>
    %79 = vector.broadcast %78 : vector<1x1x128xf32> to vector<8x8x128xf32>
    %80 = arith.addf %76, %79 : vector<8x8x128xf32>
    %cst_50 = arith.constant 0.000000e+00 : f32
    %81 = vector.broadcast %cst_50 : f32 to vector<8x8x128xf32>
    %82 = arith.maximumf %80, %81 : vector<8x8x128xf32>
    %83 = vector.shape_cast %82 : vector<8x8x128xf32> to vector<64x128xf32>
    %84 = arith.truncf %83 : vector<64x128xf32> to vector<64x128xbf16>
    %c0_51 = arith.constant 0 : index
    %c0_52 = arith.constant 0 : index
    %85 = vector.load %arg4[%c0_51, %c0_52] : memref<128x128xbf16, #tpu.memory_space<vmem>>, vector<128x128xbf16>
    %cst_53 = arith.constant dense<0.000000e+00> : vector<64x128xf32>
    %86 = tpu.matmul %84, %85, %cst_53 {dimension_numbers = #tpu.dot_dimension_numbers<[1], [0], [0], [1], [0, 0, 1, 1], [], []>} : vector<64x128xbf16>, vector<128x128xbf16>, vector<64x128xf32> -> vector<64x128xf32>
    %c0_54 = arith.constant 0 : index
    %c0_55 = arith.constant 0 : index
    %87 = vector.load %arg5[%c0_54, %c0_55] : memref<1x128xf32, #tpu.memory_space<vmem>>, vector<1x128xf32>
    %88 = vector.broadcast %87 : vector<1x128xf32> to vector<64x128xf32>
    %89 = arith.addf %86, %88 : vector<64x128xf32>
    %cst_56 = arith.constant 0.000000e+00 : f32
    %90 = vector.broadcast %cst_56 : f32 to vector<64x128xf32>
    %91 = arith.maximumf %89, %90 : vector<64x128xf32>
    %92 = vector.shape_cast %91 : vector<64x128xf32> to vector<8x8x128xf32>
    %93 = arith.truncf %92 : vector<8x8x128xf32> to vector<8x8x128xbf16>
    %c0_57 = arith.constant 0 : index
    %c0_58 = arith.constant 0 : index
    %c0_59 = arith.constant 0 : index
    %c0_60 = arith.constant 0 : index
    %94 = vector.load %arg6[%c0_57, %c0_58, %c0_59, %c0_60] : memref<1x8x8x128xbf16, #tpu.memory_space<vmem>>, vector<1x8x8x128xbf16>
    %95 = vector.shape_cast %94 : vector<1x8x8x128xbf16> to vector<8x8x128xbf16>
    %96 = vector.shape_cast %93 : vector<8x8x128xbf16> to vector<1x8x8x128xbf16>
    tpu.vector_store %arg6[%c0_57, %c0_58, %c0_59, %c0_60], %96 {strides = array<i32>} : memref<1x8x8x128xbf16, #tpu.memory_space<vmem>>, vector<1x8x8x128xbf16>,
    return
  }
  func.func @transform_0(%arg0: i32) -> (i32, i32, i32, i32) {
    %c0_i32 = arith.constant 0 : i32
    %c0_i32_0 = arith.constant 0 : i32
    %c0_i32_1 = arith.constant 0 : i32
    %c0_i32_2 = arith.constant 0 : i32
    return %arg0, %c0_i32, %c0_i32_0, %c0_i32_1 : i32, i32, i32, i32
  }
  func.func @transform_1(%arg0: i32) -> (i32, i32) {
    %c0_i32 = arith.constant 0 : i32
    %c0_i32_0 = arith.constant 0 : i32
    %c0_i32_1 = arith.constant 0 : i32
    return %c0_i32, %c0_i32_0 : i32, i32
  }
  func.func @transform_2(%arg0: i32) -> (i32, i32) {
    %c0_i32 = arith.constant 0 : i32
    %c0_i32_0 = arith.constant 0 : i32
    %c0_i32_1 = arith.constant 0 : i32
    return %c0_i32, %c0_i32_0 : i32, i32
  }
  func.func @transform_3(%arg0: i32) -> (i32, i32) {
    %c0_i32 = arith.constant 0 : i32
    %c0_i32_0 = arith.constant 0 : i32
    %c0_i32_1 = arith.constant 0 : i32
    return %c0_i32, %c0_i32_0 : i32, i32
  }
  func.func @transform_4(%arg0: i32) -> (i32, i32) {
    %c0_i32 = arith.constant 0 : i32
    %c0_i32_0 = arith.constant 0 : i32
    %c0_i32_1 = arith.constant 0 : i32
    return %c0_i32, %c0_i32_0 : i32, i32
  }
  func.func @transform_5(%arg0: i32) -> (i32, i32, i32, i32) {
    %c0_i32 = arith.constant 0 : i32
    %c0_i32_0 = arith.constant 0 : i32
    %c0_i32_1 = arith.constant 0 : i32
    %c0_i32_2 = arith.constant 0 : i32
    return %arg0, %c0_i32, %c0_i32_0, %c0_i32_1 : i32, i32, i32, i32
  }
}

</mosaic_0001>

<llo_original>
// kernel: tpu_custom_call.1
$region0: #{tpu_custom_call.1}
  #allocation0 [shape = 'u32[]', space=smem, size = 0x4, offset = 0x4, fixed_abs, tag = 'smem constant byte address 0x4 - core index']
  #allocation1 [shape = 'u32[144,128]{1,0:T(1,128)}', space=vmem, size = 0x12000, scoped, tag = 'internal scratch']
  #allocation2 [shape = 'f32[18,18,128]{2,1,0:T(8,128)}', space=vmem, size = 0x36000, scoped, tag = 'scratch operand']
  %s0 = inlined_call_operand.hbm [shape: bf16[2,16,16,128], index: 0, kind: input, shape index: {}]
  %s1 = inlined_call_operand.hbm [shape: f32[9,128], index: 1, kind: input, shape index: {}]
  %s2 = inlined_call_operand.vmem [shape: f32[1,128], index: 2, kind: input, shape index: {}]
  %s3 = inlined_call_operand.hbm [shape: bf16[128,128], index: 3, kind: input, shape index: {}]
  %s4 = inlined_call_operand.vmem [shape: f32[1,128], index: 4, kind: input, shape index: {}]
  %s5 = inlined_call_operand.hbm [shape: bf16[2,8,8,128], index: 5, kind: output, shape index: {}]
  %s6 = sld [smem:[#allocation0]]
  $region65: #{tpu_custom_call.1} parent=0
    _
  %s8 = ssub.s32 1, %s6
  %s9 = scalar_select 0, %s8, %s6
  $region1: #{tpu_custom_call.1} parent=0
    #allocation3 [shape = 'u8[131072]{0}', space=vmem, size = 0x20000, scoped, tag = 'input window, operand 0']
    #allocation4 [shape = 's32[2]{0}', space=sflag, size = 0x8, scoped, tag = 'scoped memory for tpu_custom_call.1']
    #allocation5 [shape = 's32[2]{0}', space=sflag, size = 0x8, scoped, tag = 'scoped memory for tpu_custom_call.1']
    #allocation6 [shape = 'u8[8192]{0}', space=vmem, size = 0x2000, scoped, tag = 'input window, operand 1, single buffered']
    #allocation7 [shape = 's32[1]{0}', space=sflag, size = 0x4, scoped, tag = 'scoped memory for tpu_custom_call.1']
    #allocation8 [shape = 'u8[32768]{0}', space=vmem, size = 0x8000, scoped, tag = 'input window, operand 3, single buffered']
    #allocation9 [shape = 'u8[32768]{0}', space=vmem, size = 0x8000, scoped, tag = 'output window, operand 0']
    %10 = vsyncpa [#allocation4], 0
    %s11 = scalar_lea.sflag [#allocation4], 1
    %12 = vsyncpa %s11, 0
    %13 = vsyncpa [#allocation7], 0
    %14 = vsyncpa [#allocation5], 0
    %s15 = scalar_lea.sflag [#allocation5], 1
    %16 = vsyncpa %s15, 0
    loop: start=0, step=1, limit=4
    $region2: #{tpu_custom_call.1} parent=1 // loop_pre_header
      _
    $region3: #{tpu_custom_call.1} parent=1 // loop_header
      %s18 = sphi 0, %s22
      %p19 = scmp.ge.s32.totalorder %s18, 4
      %s28 = sphi 0, %s30
      %s31 = sphi 0, %s28
      %s32 = sphi 0, %s31
      %s48 = sphi 0, %s32
      %s52 = sphi 0, %s52
      %s54 = sphi 0, %s52
      %s55 = sphi 0, %s54
      %s69 = sphi 0, %s55
      %s73 = sphi 0, %s73
      %s75 = sphi 0, %s73
      %s76 = sphi 0, %s75
      %s90 = sphi 0, %s76
      %s94 = sphi 0, %s94
      %s96 = sphi 0, %s94
      %s97 = sphi 0, %s96
      %s111 = sphi 0, %s97
      %s115 = sphi 0, %s115
      %s117 = sphi 0, %s115
      %s118 = sphi 0, %s117
      %s132 = sphi 0, %s118
      %s138 = sphi 0, %s140
      %s141 = sphi 0, %s138
      %s142 = sphi 0, %s141
      %s158 = sphi 0, %s142
    $region4: #{tpu_custom_call.1} parent=1 // loop_header_branch
      %21 = sbr.rel (%p19) target = $region8
    $region5: #{tpu_custom_call.1} parent=1 // loop_body
      %s23 = ssub.s32 %s18, 1
      %s24 = ssub.s32 %s18, 2
      %s25 = sadd.s32 %s18, 1
      %s26 = ssub.s32 %s18, %s25
      %p27 = scmp.eq.s32.totalorder %s26, 0
      %s29 = sadd.s32 %s28, 1
      %s30 = scalar_select %p27, %s28, %s29
      %p33 = pneg %p27
      %p34 = scmp.eq.s32.totalorder %s18, 1
      %p35 = por %p33, %p34
      %p36 = scmp.ne.s32.totalorder %s28, %s31
      %p37 = scmp.eq.s32.totalorder %s18, 0
      %p38 = por %p36, %p37
      %p39 = scmp.ne.s32.totalorder %s28, %s31
      %p40 = scmp.eq.s32.totalorder %s23, 1
      %p41 = por %p39, %p40
      %p42 = scmp.ne.s32.totalorder %s31, %s32
      %p43 = scmp.eq.s32.totalorder %s23, 0
      %p44 = por %p42, %p43
      %p45 = scmp.ne.s32.totalorder %s31, %s32
      %p46 = scmp.eq.s32.totalorder %s24, 1
      %p47 = por %p45, %p46
      %p49 = scmp.ne.s32.totalorder %s32, %s48
      %p50 = scmp.eq.s32.totalorder %s24, 0
      %p51 = por %p49, %p50
      %s53 = sadd.s32 %s52, 1
      %p56 = scmp.eq.s32.totalorder %s18, 1
      %p57 = scmp.ne.s32.totalorder %s52, %s54
      %p58 = scmp.eq.s32.totalorder %s18, 0
      %p59 = por %p57, %p58
      %p60 = scmp.ne.s32.totalorder %s52, %s54
      %p61 = scmp.eq.s32.totalorder %s23, 1
      %p62 = por %p60, %p61
      %p63 = scmp.ne.s32.totalorder %s54, %s55
      %p64 = scmp.eq.s32.totalorder %s23, 0
      %p65 = por %p63, %p64
      %p66 = scmp.ne.s32.totalorder %s54, %s55
      %p67 = scmp.eq.s32.totalorder %s24, 1
      %p68 = por %p66, %p67
      %p70 = scmp.ne.s32.totalorder %s55, %s69
      %p71 = scmp.eq.s32.totalorder %s24, 0
      %p72 = por %p70, %p71
      %s74 = sadd.s32 %s73, 1
      %p77 = scmp.eq.s32.totalorder %s18, 1
      %p78 = scmp.ne.s32.totalorder %s73, %s75
      %p79 = scmp.eq.s32.totalorder %s18, 0
      %p80 = por %p78, %p79
      %p81 = scmp.ne.s32.totalorder %s73, %s75
      %p82 = scmp.eq.s32.totalorder %s23, 1
      %p83 = por %p81, %p82
      %p84 = scmp.ne.s32.totalorder %s75, %s76
      %p85 = scmp.eq.s32.totalorder %s23, 0
      %p86 = por %p84, %p85
      %p87 = scmp.ne.s32.totalorder %s75, %s76
      %p88 = scmp.eq.s32.totalorder %s24, 1
      %p89 = por %p87, %p88
      %p91 = scmp.ne.s32.totalorder %s76, %s90
      %p92 = scmp.eq.s32.totalorder %s24, 0
      %p93 = por %p91, %p92
      %s95 = sadd.s32 %s94, 1
      %p98 = scmp.eq.s32.totalorder %s18, 1
      %p99 = scmp.ne.s32.totalorder %s94, %s96
      %p100 = scmp.eq.s32.totalorder %s18, 0
      %p101 = por %p99, %p100
      %p102 = scmp.ne.s32.totalorder %s94, %s96
      %p103 = scmp.eq.s32.totalorder %s23, 1
      %p104 = por %p102, %p103
      %p105 = scmp.ne.s32.totalorder %s96, %s97
      %p106 = scmp.eq.s32.totalorder %s23, 0
      %p107 = por %p105, %p106
      %p108 = scmp.ne.s32.totalorder %s96, %s97
      %p109 = scmp.eq.s32.totalorder %s24, 1
      %p110 = por %p108, %p109
      %p112 = scmp.ne.s32.totalorder %s97, %s111
      %p113 = scmp.eq.s32.totalorder %s24, 0
      %p114 = por %p112, %p113
      %s116 = sadd.s32 %s115, 1
      %p119 = scmp.eq.s32.totalorder %s18, 1
      %p120 = scmp.ne.s32.totalorder %s115, %s117
      %p121 = scmp.eq.s32.totalorder %s18, 0
      %p122 = por %p120, %p121
      %p123 = scmp.ne.s32.totalorder %s115, %s117
      %p124 = scmp.eq.s32.totalorder %s23, 1
      %p125 = por %p123, %p124
      %p126 = scmp.ne.s32.totalorder %s117, %s118
      %p127 = scmp.eq.s32.totalorder %s23, 0
      %p128 = por %p126, %p127
      %p129 = scmp.ne.s32.totalorder %s117, %s118
      %p130 = scmp.eq.s32.totalorder %s24, 1
      %p131 = por %p129, %p130
      %p133 = scmp.ne.s32.totalorder %s118, %s132
      %p134 = scmp.eq.s32.totalorder %s24, 0
      %p135 = por %p133, %p134
      %s136 = ssub.s32 %s18, %s25
      %p137 = scmp.eq.s32.totalorder %s136, 0
      %s139 = sadd.s32 %s138, 1
      %s140 = scalar_select %p137, %s138, %s139
      %p143 = pneg %p137
      %p144 = scmp.eq.s32.totalorder %s18, 1
      %p145 = por %p143, %p144
      %p146 = scmp.ne.s32.totalorder %s138, %s141
      %p147 = scmp.eq.s32.totalorder %s18, 0
      %p148 = por %p146, %p147
      %p149 = scmp.ne.s32.totalorder %s138, %s141
      %p150 = scmp.eq.s32.totalorder %s23, 1
      %p151 = por %p149, %p150
      %p152 = scmp.ne.s32.totalorder %s141, %s142
      %p153 = scmp.eq.s32.totalorder %s23, 0
      %p154 = por %p152, %p153
      %p155 = scmp.ne.s32.totalorder %s141, %s142
      %p156 = scmp.eq.s32.totalorder %s24, 1
      %p157 = por %p155, %p156
      %p159 = scmp.ne.s32.totalorder %s142, %s158
      %p160 = scmp.eq.s32.totalorder %s24, 0
      %p161 = por %p159, %p160
      %p162 = scmp.le.s32.totalorder 1, %s18
      %p163 = scmp.lt.s32.totalorder %s18, 3
      %p164 = pnand %p162, %p163
      %p165 = pneg %p164
      // Predicated region
      $region9: #{tpu_custom_call.1} parent=5 // pred_check
        _
      $region10: #{tpu_custom_call.1} parent=5 // pred_check_branch
        %167 = sbr.rel (%p164) target = $region12
      $region11: #{tpu_custom_call.1} parent=5 // pred_region
        %s168 = ssub.s32 %s18, 1
        // Predicated region
        $region13: #{tpu_custom_call.1} parent=11 // pred_check
          %p169 = pneg %p65
        $region14: #{tpu_custom_call.1} parent=11 // pred_check_branch
          %171 = sbr.rel (%p169) target = $region16
        $region15: #{tpu_custom_call.1} parent=11 // pred_region
          %s173 = ssub.s32 256, 256
          %174 = vsyncadd [#allocation7], %s173
          %s175 = sshll.u32 [#allocation6], 4
          %s176 = int_to_ptr.vmem [resolvable:$true] %s175
          %181 = dma.hbm_to_vmem [thread:$0]  %s1, 256, %s176, [#allocation7], 128, 128, 8
        $region16: #{tpu_custom_call.1} parent=11 // pred_fallthru
          _
        // Predicated region
        $region17: #{tpu_custom_call.1} parent=11 // pred_check
          %p182 = pneg %p86
        $region18: #{tpu_custom_call.1} parent=11 // pred_check_branch
          %184 = sbr.rel (%p182) target = $region20
        $region19: #{tpu_custom_call.1} parent=11 // pred_region
          _
        $region20: #{tpu_custom_call.1} parent=11 // pred_fallthru
          _
        // Predicated region
        $region21: #{tpu_custom_call.1} parent=11 // pred_check
          %p185 = pneg %p107
        $region22: #{tpu_custom_call.1} parent=11 // pred_check_branch
          %187 = sbr.rel (%p185) target = $region24
        $region23: #{tpu_custom_call.1} parent=11 // pred_region
          %s189 = ssub.s32 1024, 1024
          %190 = vsyncadd [#allocation7], %s189
          %s191 = sshll.u32 [#allocation8], 4
          %s192 = int_to_ptr.vmem [resolvable:$true] %s191
          %197 = dma.hbm_to_vmem [thread:$0]  %s3, 1024, %s192, [#allocation7], 64, 64, 4
        $region24: #{tpu_custom_call.1} parent=11 // pred_fallthru
          _
        // Predicated region
        $region25: #{tpu_custom_call.1} parent=11 // pred_check
          %p198 = pneg %p128
        $region26: #{tpu_custom_call.1} parent=11 // pred_check_branch
          %200 = sbr.rel (%p198) target = $region28
        $region27: #{tpu_custom_call.1} parent=11 // pred_region
          _
        $region28: #{tpu_custom_call.1} parent=11 // pred_fallthru
          _
      $region12: #{tpu_custom_call.1} parent=5 // pred_fallthru
        _
      %p201 = scmp.lt.s32.totalorder %s18, 2
      // Predicated region
      $region29: #{tpu_custom_call.1} parent=5 // pred_check
        %p202 = pneg %p201
      $region30: #{tpu_custom_call.1} parent=5 // pred_check_branch
        %204 = sbr.rel (%p202) target = $region32
      $region31: #{tpu_custom_call.1} parent=5 // pred_region
        // Predicated region
        $region33: #{tpu_custom_call.1} parent=31 // pred_check
          %p205 = pneg %p38
        $region34: #{tpu_custom_call.1} parent=31 // pred_check_branch
          %207 = sbr.rel (%p205) target = $region36
        $region35: #{tpu_custom_call.1} parent=31 // pred_region
          %s208 = sand.u32 %s28, 1
          %s209 = scalar_lea.sflag [#allocation4], %s208
          %s210 = sand.u32 %s28, 1
          %s211 = smul.addr %s210, 128
          %s212 = scalar_lea.vmem [#allocation3], %s211
          %s214 = ssub.s32 2048, 2048
          %215 = vsyncadd %s209, %s214
          %s216 = smul.addr %s18, 32
          %s217 = smul.addr %s216, 64
          %s218 = scalar_lea.hbm %s0, %s217
          %s219 = sshll.u32 %s212, 4
          %s220 = int_to_ptr.vmem [resolvable:$true] %s219
          %225 = dma.hbm_to_vmem [thread:$0]  %s218, 2048, %s220, %s209, 64, 64, 4
        $region36: #{tpu_custom_call.1} parent=31 // pred_fallthru
          _
      $region32: #{tpu_custom_call.1} parent=5 // pred_fallthru
        _
      %p226 = scmp.le.s32.totalorder 1, %s18
      %p227 = scmp.lt.s32.totalorder %s18, 3
      %p228 = pnand %p226, %p227
      %p229 = pneg %p228
      // Predicated region
      $region37: #{tpu_custom_call.1} parent=5 // pred_check
        _
      $region38: #{tpu_custom_call.1} parent=5 // pred_check_branch
        %231 = sbr.rel (%p228) target = $region40
      $region39: #{tpu_custom_call.1} parent=5 // pred_region
        %s232 = ssub.s32 %s18, 1
        %s233 = sand.u32 %s31, 1
        %s234 = scalar_lea.sflag [#allocation4], %s233
        %s235 = sand.u32 %s31, 1
        %s236 = smul.addr %s235, 128
        %s237 = scalar_lea.vmem [#allocation3], %s236
        // Predicated region
        $region41: #{tpu_custom_call.1} parent=39 // pred_check
          %p238 = pneg %p44
        $region42: #{tpu_custom_call.1} parent=39 // pred_check_branch
          %240 = sbr.rel (%p238) target = $region44
        $region43: #{tpu_custom_call.1} parent=39 // pred_region
          %241 = dma.done %s234, 2048
        $region44: #{tpu_custom_call.1} parent=39 // pred_fallthru
          _
        // Predicated region
        $region45: #{tpu_custom_call.1} parent=39 // pred_check
          %p242 = pneg %p65
        $region46: #{tpu_custom_call.1} parent=39 // pred_check_branch
          %244 = sbr.rel (%p242) target = $region48
        $region47: #{tpu_custom_call.1} parent=39 // pred_region
          %245 = dma.done [#allocation7], 256
        $region48: #{tpu_custom_call.1} parent=39 // pred_fallthru
          _
        // Predicated region
        $region49: #{tpu_custom_call.1} parent=39 // pred_check
          %p246 = pneg %p107
        $region50: #{tpu_custom_call.1} parent=39 // pred_check_branch
          %248 = sbr.rel (%p246) target = $region52
        $region51: #{tpu_custom_call.1} parent=39 // pred_region
          %249 = dma.done [#allocation7], 1024
        $region52: #{tpu_custom_call.1} parent=39 // pred_fallthru
          _
        %s250 = sand.u32 %s31, 1
        %s251 = scalar_lea.sflag [#allocation4], %s250
        %s252 = sand.u32 %s31, 1
        %s253 = smul.addr %s252, 128
        %s254 = scalar_lea.vmem [#allocation3], %s253
        %p255 = pneg %p44
        %p256 = pneg %p41
        %p257 = pneg %p65
        %p258 = pneg %p62
        %p259 = pneg %p86
        %p260 = pneg %p83
        %p261 = pneg %p107
        %p262 = pneg %p104
        %p263 = pneg %p128
        %p264 = pneg %p125
        %p265 = pneg %p154
        %p266 = pneg %p151
        %s267 = sand.u32 %s141, 1
        %s268 = scalar_lea.sflag [#allocation5], %s267
        %s269 = sand.u32 %s141, 1
        %s270 = smul.addr %s269, 32
        %s271 = scalar_lea.vmem [#allocation9], %s270
        %273 = vst [vmem:[#allocation2] sm:$0xff] 0.0
        %274 = vst [vmem:[#allocation2 + $0x8] sm:$0xff] 0.0
        %275 = vst [vmem:[#allocation2 + $0x10] sm:$0x3] 0.0
        %s276 = scalar_lea.vmem [#allocation2], 408
        %277 = vst [vmem:[%s276] sm:$0xff] 0.0
        %278 = vst [vmem:[%s276 + $0x8] sm:$0xff] 0.0
        %279 = vst [vmem:[%s276 + $0x10] sm:$0x3] 0.0
        %s280 = scalar_lea.vmem [#allocation2], 24
        %281 = vst [vmem:[%s280] sm:$0x1] 0.0
        %282 = vst [vmem:[%s280 + $0x18] sm:$0x1] 0.0
        %283 = vst [vmem:[%s280 + $0x30] sm:$0x1] 0.0
        %284 = vst [vmem:[%s280 + $0x48] sm:$0x1] 0.0
        %285 = vst [vmem:[%s280 + $0x60] sm:$0x1] 0.0
        %286 = vst [vmem:[%s280 + $0x78] sm:$0x1] 0.0
        %287 = vst [vmem:[%s280 + $0x90] sm:$0x1] 0.0
        %288 = vst [vmem:[%s280 + $0xa8] sm:$0x1] 0.0
        %289 = vst [vmem:[%s280 + $0xc0] sm:$0x1] 0.0
        %290 = vst [vmem:[%s280 + $0xd8] sm:$0x1] 0.0
        %291 = vst [vmem:[%s280 + $0xf0] sm:$0x1] 0.0
        %292 = vst [vmem:[%s280 + $0x108] sm:$0x1] 0.0
        %293 = vst [vmem:[%s280 + $0x120] sm:$0x1] 0.0
        %294 = vst [vmem:[%s280 + $0x138] sm:$0x1] 0.0
        %295 = vst [vmem:[%s280 + $0x150] sm:$0x1] 0.0
        %296 = vst [vmem:[%s280 + $0x168] sm:$0x1] 0.0
        %297 = vst [vmem:[%s280 + $0x11] sm:$0x1] 0.0
        %298 = vst [vmem:[%s280 + $0x29] sm:$0x1] 0.0
        %299 = vst [vmem:[%s280 + $0x41] sm:$0x1] 0.0
        %300 = vst [vmem:[%s280 + $0x59] sm:$0x1] 0.0
        %301 = vst [vmem:[%s280 + $0x71] sm:$0x1] 0.0
        %302 = vst [vmem:[%s280 + $0x89] sm:$0x1] 0.0
        %303 = vst [vmem:[%s280 + $0xa1] sm:$0x1] 0.0
        %304 = vst [vmem:[%s280 + $0xb9] sm:$0x1] 0.0
        %305 = vst [vmem:[%s280 + $0xd1] sm:$0x1] 0.0
        %306 = vst [vmem:[%s280 + $0xe9] sm:$0x1] 0.0
        %307 = vst [vmem:[%s280 + $0x101] sm:$0x1] 0.0
        %308 = vst [vmem:[%s280 + $0x119] sm:$0x1] 0.0
        %309 = vst [vmem:[%s280 + $0x131] sm:$0x1] 0.0
        %310 = vst [vmem:[%s280 + $0x149] sm:$0x1] 0.0
        %311 = vst [vmem:[%s280 + $0x161] sm:$0x1] 0.0
        %312 = vst [vmem:[%s280 + $0x179] sm:$0x1] 0.0
        %v313 = vld [vmem:[%s237] sm:$0xf]
        %v314 = vld [vmem:[%s237 + $0x4] sm:$0xf]
        %v315 = vld [vmem:[%s237 + $0x8] sm:$0xf]
        %v316 = vld [vmem:[%s237 + $0xc] sm:$0xf]
        %v317 = vld [vmem:[%s237 + $0x10] sm:$0xf]
        %v318 = vld [vmem:[%s237 + $0x14] sm:$0xf]
        %v319 = vld [vmem:[%s237 + $0x18] sm:$0xf]
        %v320 = vld [vmem:[%s237 + $0x1c] sm:$0xf]
        %v321 = vld [vmem:[%s237 + $0x20] sm:$0xf]
        %v322 = vld [vmem:[%s237 + $0x24] sm:$0xf]
        %v323 = vld [vmem:[%s237 + $0x28] sm:$0xf]
        %v324 = vld [vmem:[%s237 + $0x2c] sm:$0xf]
        %v325 = vld [vmem:[%s237 + $0x30] sm:$0xf]
        %v326 = vld [vmem:[%s237 + $0x34] sm:$0xf]
        %v327 = vld [vmem:[%s237 + $0x38] sm:$0xf]
        %v328 = vld [vmem:[%s237 + $0x3c] sm:$0xf]
        %v329 = vld [vmem:[%s237 + $0x40] sm:$0xf]
        %v330 = vld [vmem:[%s237 + $0x44] sm:$0xf]
        %v331 = vld [vmem:[%s237 + $0x48] sm:$0xf]
        %v332 = vld [vmem:[%s237 + $0x4c] sm:$0xf]
        %v333 = vld [vmem:[%s237 + $0x50] sm:$0xf]
        %v334 = vld [vmem:[%s237 + $0x54] sm:$0xf]
        %v335 = vld [vmem:[%s237 + $0x58] sm:$0xf]
        %v336 = vld [vmem:[%s237 + $0x5c] sm:$0xf]
        %v337 = vld [vmem:[%s237 + $0x60] sm:$0xf]
        %v338 = vld [vmem:[%s237 + $0x64] sm:$0xf]
        %v339 = vld [vmem:[%s237 + $0x68] sm:$0xf]
        %v340 = vld [vmem:[%s237 + $0x6c] sm:$0xf]
        %v341 = vld [vmem:[%s237 + $0x70] sm:$0xf]
        %v342 = vld [vmem:[%s237 + $0x74] sm:$0xf]
        %v343 = vld [vmem:[%s237 + $0x78] sm:$0xf]
        %v344 = vld [vmem:[%s237 + $0x7c] sm:$0xf]
        %v345 = vunpack.c.l.bf16 %v313
        %v346 = vunpack.c.l.bf16 %v314
        %v347 = vunpack.c.l.bf16 %v315
        %v348 = vunpack.c.l.bf16 %v316
        %v349 = vunpack.c.l.bf16 %v317
        %v350 = vunpack.c.l.bf16 %v318
        %v351 = vunpack.c.l.bf16 %v319
        %v352 = vunpack.c.l.bf16 %v320
        %v353 = vunpack.c.l.bf16 %v321
        %v354 = vunpack.c.l.bf16 %v322
        %v355 = vunpack.c.l.bf16 %v323
        %v356 = vunpack.c.l.bf16 %v324
        %v357 = vunpack.c.l.bf16 %v325
        %v358 = vunpack.c.l.bf16 %v326
        %v359 = vunpack.c.l.bf16 %v327
        %v360 = vunpack.c.l.bf16 %v328
        %v361 = vunpack.c.l.bf16 %v329
        %v362 = vunpack.c.l.bf16 %v330
        %v363 = vunpack.c.l.bf16 %v331
        %v364 = vunpack.c.l.bf16 %v332
        %v365 = vunpack.c.l.bf16 %v333
        %v366 = vunpack.c.l.bf16 %v334
        %v367 = vunpack.c.l.bf16 %v335
        %v368 = vunpack.c.l.bf16 %v336
        %v369 = vunpack.c.l.bf16 %v337
        %v370 = vunpack.c.l.bf16 %v338
        %v371 = vunpack.c.l.bf16 %v339
        %v372 = vunpack.c.l.bf16 %v340
        %v373 = vunpack.c.l.bf16 %v341
        %v374 = vunpack.c.l.bf16 %v342
        %v375 = vunpack.c.l.bf16 %v343
        %v376 = vunpack.c.l.bf16 %v344
        %377 = vst [vmem:[%s280 + $0x1] sm:$0xff] %v345
        %378 = vst [vmem:[%s280 + $0x9] sm:$0xff] %v346
        %379 = vst [vmem:[%s280 + $0x19] sm:$0xff] %v347
        %380 = vst [vmem:[%s280 + $0x21] sm:$0xff] %v348
        %381 = vst [vmem:[%s280 + $0x31] sm:$0xff] %v349
        %382 = vst [vmem:[%s280 + $0x39] sm:$0xff] %v350
        %383 = vst [vmem:[%s280 + $0x49] sm:$0xff] %v351
        %384 = vst [vmem:[%s280 + $0x51] sm:$0xff] %v352
        %385 = vst [vmem:[%s280 + $0x61] sm:$0xff] %v353
        %386 = vst [vmem:[%s280 + $0x69] sm:$0xff] %v354
        %387 = vst [vmem:[%s280 + $0x79] sm:$0xff] %v355
        %388 = vst [vmem:[%s280 + $0x81] sm:$0xff] %v356
        %389 = vst [vmem:[%s280 + $0x91] sm:$0xff] %v357
        %390 = vst [vmem:[%s280 + $0x99] sm:$0xff] %v358
        %391 = vst [vmem:[%s280 + $0xa9] sm:$0xff] %v359
        %392 = vst [vmem:[%s280 + $0xb1] sm:$0xff] %v360
        %393 = vst [vmem:[%s280 + $0xc1] sm:$0xff] %v361
        %394 = vst [vmem:[%s280 + $0xc9] sm:$0xff] %v362
        %395 = vst [vmem:[%s280 + $0xd9] sm:$0xff] %v363
        %396 = vst [vmem:[%s280 + $0xe1] sm:$0xff] %v364
        %397 = vst [vmem:[%s280 + $0xf1] sm:$0xff] %v365
        %398 = vst [vmem:[%s280 + $0xf9] sm:$0xff] %v366
        %399 = vst [vmem:[%s280 + $0x109] sm:$0xff] %v367
        %400 = vst [vmem:[%s280 + $0x111] sm:$0xff] %v368
        %401 = vst [vmem:[%s280 + $0x121] sm:$0xff] %v369
        %402 = vst [vmem:[%s280 + $0x129] sm:$0xff] %v370
        %403 = vst [vmem:[%s280 + $0x139] sm:$0xff] %v371
        %404 = vst [vmem:[%s280 + $0x141] sm:$0xff] %v372
        %405 = vst [vmem:[%s280 + $0x151] sm:$0xff] %v373
        %406 = vst [vmem:[%s280 + $0x159] sm:$0xff] %v374
        %407 = vst [vmem:[%s280 + $0x169] sm:$0xff] %v375
        %408 = vst [vmem:[%s280 + $0x171] sm:$0xff] %v376
        %v409 = vld [vmem:[#allocation6] sm:$0xff]
        %v410 = vld [vmem:[#allocation6 + $0x8] sm:$0x1]
        %v411 = vld [vmem:[#allocation2] ss:$2 sm:$0xff]
        %s412 = scalar_lea.vmem [#allocation2], 48
        %v413 = vld [vmem:[%s412] ss:$2 sm:$0xff]
        %s414 = scalar_lea.vmem [#allocation2], 96
        %v415 = vld [vmem:[%s414] ss:$2 sm:$0xff]
        %s416 = scalar_lea.vmem [#allocation2], 144
        %v417 = vld [vmem:[%s416] ss:$2 sm:$0xff]
        %s418 = scalar_lea.vmem [#allocation2], 192
        %v419 = vld [vmem:[%s418] ss:$2 sm:$0xff]
        %s420 = scalar_lea.vmem [#allocation2], 240
        %v421 = vld [vmem:[%s420] ss:$2 sm:$0xff]
        %s422 = scalar_lea.vmem [#allocation2], 288
        %v423 = vld [vmem:[%s422] ss:$2 sm:$0xff]
        %s424 = scalar_lea.vmem [#allocation2], 336
        %v425 = vld [vmem:[%s424] ss:$2 sm:$0xff]
        %v426 = vlaneseq
        %v427 = vshrl.u32 %v426, 7
        %v428 = vsub.s32 0, %v427
        %v429 = vrot.slane %v409, %v428
        %v430 = vmul.f32 %v411, %v429
        %v431 = vmul.f32 %v413, %v429
        %v432 = vmul.f32 %v415, %v429
        %v433 = vmul.f32 %v417, %v429
        %v434 = vmul.f32 %v419, %v429
        %v435 = vmul.f32 %v421, %v429
        %v436 = vmul.f32 %v423, %v429
        %v437 = vmul.f32 %v425, %v429
        %v438 = vadd.f32 %v430, 0.0
        %v439 = vadd.f32 %v431, 0.0
        %v440 = vadd.f32 %v432, 0.0
        %v441 = vadd.f32 %v433, 0.0
        %v442 = vadd.f32 %v434, 0.0
        %v443 = vadd.f32 %v435, 0.0
        %v444 = vadd.f32 %v436, 0.0
        %v445 = vadd.f32 %v437, 0.0
        %s446 = scalar_lea.vmem [#allocation2], 1
        %v447 = vld [vmem:[%s446] ss:$2 sm:$0xff]
        %s448 = scalar_lea.vmem [#allocation2], 49
        %v449 = vld [vmem:[%s448] ss:$2 sm:$0xff]
        %s450 = scalar_lea.vmem [#allocation2], 97
        %v451 = vld [vmem:[%s450] ss:$2 sm:$0xff]
        %s452 = scalar_lea.vmem [#allocation2], 145
        %v453 = vld [vmem:[%s452] ss:$2 sm:$0xff]
        %s454 = scalar_lea.vmem [#allocation2], 193
        %v455 = vld [vmem:[%s454] ss:$2 sm:$0xff]
        %s456 = scalar_lea.vmem [#allocation2], 241
        %v457 = vld [vmem:[%s456] ss:$2 sm:$0xff]
        %s458 = scalar_lea.vmem [#allocation2], 289
        %v459 = vld [vmem:[%s458] ss:$2 sm:$0xff]
        %s460 = scalar_lea.vmem [#allocation2], 337
        %v461 = vld [vmem:[%s460] ss:$2 sm:$0xff]
        %v462 = vlaneseq
        %v463 = vshrl.u32 %v462, 7
        %v464 = vsub.s32 1, %v463
        %v465 = vrot.slane %v409, %v464
        %v466 = vmul.f32 %v447, %v465
        %v467 = vmul.f32 %v449, %v465
        %v468 = vmul.f32 %v451, %v465
        %v469 = vmul.f32 %v453, %v465
        %v470 = vmul.f32 %v455, %v465
        %v471 = vmul.f32 %v457, %v465
        %v472 = vmul.f32 %v459, %v465
        %v473 = vmul.f32 %v461, %v465
        %v474 = vadd.f32 %v438, %v466
        %v475 = vadd.f32 %v439, %v467
        %v476 = vadd.f32 %v440, %v468
        %v477 = vadd.f32 %v441, %v469
        %v478 = vadd.f32 %v442, %v470
        %v479 = vadd.f32 %v443, %v471
        %v480 = vadd.f32 %v444, %v472
        %v481 = vadd.f32 %v445, %v473
        %s482 = scalar_lea.vmem [#allocation2], 2
        %v483 = vld [vmem:[%s482] ss:$2 sm:$0xff]
        %s484 = scalar_lea.vmem [#allocation2], 50
        %v485 = vld [vmem:[%s484] ss:$2 sm:$0xff]
        %s486 = scalar_lea.vmem [#allocation2], 98
        %v487 = vld [vmem:[%s486] ss:$2 sm:$0xff]
        %s488 = scalar_lea.vmem [#allocation2], 146
        %v489 = vld [vmem:[%s488] ss:$2 sm:$0xff]
        %s490 = scalar_lea.vmem [#allocation2], 194
        %v491 = vld [vmem:[%s490] ss:$2 sm:$0xff]
        %s492 = scalar_lea.vmem [#allocation2], 242
        %v493 = vld [vmem:[%s492] ss:$2 sm:$0xff]
        %s494 = scalar_lea.vmem [#allocation2], 290
        %v495 = vld [vmem:[%s494] ss:$2 sm:$0xff]
        %s496 = scalar_lea.vmem [#allocation2], 338
        %v497 = vld [vmem:[%s496] ss:$2 sm:$0xff]
        %v498 = vlaneseq
        %v499 = vshrl.u32 %v498, 7
        %v500 = vsub.s32 2, %v499
        %v501 = vrot.slane %v409, %v500
        %v502 = vmul.f32 %v483, %v501
        %v503 = vmul.f32 %v485, %v501
        %v504 = vmul.f32 %v487, %v501
        %v505 = vmul.f32 %v489, %v501
        %v506 = vmul.f32 %v491, %v501
        %v507 = vmul.f32 %v493, %v501
        %v508 = vmul.f32 %v495, %v501
        %v509 = vmul.f32 %v497, %v501
        %v510 = vadd.f32 %v474, %v502
        %v511 = vadd.f32 %v475, %v503
        %v512 = vadd.f32 %v476, %v504
        %v513 = vadd.f32 %v477, %v505
        %v514 = vadd.f32 %v478, %v506
        %v515 = vadd.f32 %v479, %v507
        %v516 = vadd.f32 %v480, %v508
        %v517 = vadd.f32 %v481, %v509
        %v518 = vld [vmem:[%s280] ss:$2 sm:$0xff]
        %s519 = scalar_lea.vmem %s280, 48 [#allocation2]
        %v520 = vld [vmem:[%s519] ss:$2 sm:$0xff]
        %s521 = scalar_lea.vmem %s280, 96 [#allocation2]
        %v522 = vld [vmem:[%s521] ss:$2 sm:$0xff]
        %s523 = scalar_lea.vmem %s280, 144 [#allocation2]
        %v524 = vld [vmem:[%s523] ss:$2 sm:$0xff]
        %s525 = scalar_lea.vmem %s280, 192 [#allocation2]
        %v526 = vld [vmem:[%s525] ss:$2 sm:$0xff]
        %s527 = scalar_lea.vmem %s280, 240 [#allocation2]
        %v528 = vld [vmem:[%s527] ss:$2 sm:$0xff]
        %s529 = scalar_lea.vmem %s280, 288 [#allocation2]
        %v530 = vld [vmem:[%s529] ss:$2 sm:$0xff]
        %s531 = scalar_lea.vmem %s280, 336 [#allocation2]
        %v532 = vld [vmem:[%s531] ss:$2 sm:$0xff]
        %v533 = vlaneseq
        %v534 = vshrl.u32 %v533, 7
        %v535 = vsub.s32 3, %v534
        %v536 = vrot.slane %v409, %v535
        %v537 = vmul.f32 %v518, %v536
        %v538 = vmul.f32 %v520, %v536
        %v539 = vmul.f32 %v522, %v536
        %v540 = vmul.f32 %v524, %v536
        %v541 = vmul.f32 %v526, %v536
        %v542 = vmul.f32 %v528, %v536
        %v543 = vmul.f32 %v530, %v536
        %v544 = vmul.f32 %v532, %v536
        %v545 = vadd.f32 %v510, %v537
        %v546 = vadd.f32 %v511, %v538
        %v547 = vadd.f32 %v512, %v539
        %v548 = vadd.f32 %v513, %v540
        %v549 = vadd.f32 %v514, %v541
        %v550 = vadd.f32 %v515, %v542
        %v551 = vadd.f32 %v516, %v543
        %v552 = vadd.f32 %v517, %v544
        %s553 = scalar_lea.vmem %s280, 1 [#allocation2]
        %v554 = vld [vmem:[%s553] ss:$2 sm:$0xff]
        %s555 = scalar_lea.vmem %s280, 49 [#allocation2]
        %v556 = vld [vmem:[%s555] ss:$2 sm:$0xff]
        %s557 = scalar_lea.vmem %s280, 97 [#allocation2]
        %v558 = vld [vmem:[%s557] ss:$2 sm:$0xff]
        %s559 = scalar_lea.vmem %s280, 145 [#allocation2]
        %v560 = vld [vmem:[%s559] ss:$2 sm:$0xff]
        %s561 = scalar_lea.vmem %s280, 193 [#allocation2]
        %v562 = vld [vmem:[%s561] ss:$2 sm:$0xff]
        %s563 = scalar_lea.vmem %s280, 241 [#allocation2]
        %v564 = vld [vmem:[%s563] ss:$2 sm:$0xff]
        %s565 = scalar_lea.vmem %s280, 289 [#allocation2]
        %v566 = vld [vmem:[%s565] ss:$2 sm:$0xff]
        %s567 = scalar_lea.vmem %s280, 337 [#allocation2]
        %v568 = vld [vmem:[%s567] ss:$2 sm:$0xff]
        %v569 = vlaneseq
        %v570 = vshrl.u32 %v569, 7
        %v571 = vsub.s32 4, %v570
        %v572 = vrot.slane %v409, %v571
        %v573 = vmul.f32 %v554, %v572
        %v574 = vmul.f32 %v556, %v572
        %v575 = vmul.f32 %v558, %v572
        %v576 = vmul.f32 %v560, %v572
        %v577 = vmul.f32 %v562, %v572
        %v578 = vmul.f32 %v564, %v572
        %v579 = vmul.f32 %v566, %v572
        %v580 = vmul.f32 %v568, %v572
        %v581 = vadd.f32 %v545, %v573
        %v582 = vadd.f32 %v546, %v574
        %v583 = vadd.f32 %v547, %v575
        %v584 = vadd.f32 %v548, %v576
        %v585 = vadd.f32 %v549, %v577
        %v586 = vadd.f32 %v550, %v578
        %v587 = vadd.f32 %v551, %v579
        %v588 = vadd.f32 %v552, %v580
        %s589 = scalar_lea.vmem %s280, 2 [#allocation2]
        %v590 = vld [vmem:[%s589] ss:$2 sm:$0xff]
        %s591 = scalar_lea.vmem %s280, 50 [#allocation2]
        %v592 = vld [vmem:[%s591] ss:$2 sm:$0xff]
        %s593 = scalar_lea.vmem %s280, 98 [#allocation2]
        %v594 = vld [vmem:[%s593] ss:$2 sm:$0xff]
        %s595 = scalar_lea.vmem %s280, 146 [#allocation2]
        %v596 = vld [vmem:[%s595] ss:$2 sm:$0xff]
        %s597 = scalar_lea.vmem %s280, 194 [#allocation2]
        %v598 = vld [vmem:[%s597] ss:$2 sm:$0xff]
        %s599 = scalar_lea.vmem %s280, 242 [#allocation2]
        %v600 = vld [vmem:[%s599] ss:$2 sm:$0xff]
        %s601 = scalar_lea.vmem %s280, 290 [#allocation2]
        %v602 = vld [vmem:[%s601] ss:$2 sm:$0xff]
        %s603 = scalar_lea.vmem %s280, 338 [#allocation2]
        %v604 = vld [vmem:[%s603] ss:$2 sm:$0xff]
        %v605 = vlaneseq
        %v606 = vshrl.u32 %v605, 7
        %v607 = vsub.s32 5, %v606
        %v608 = vrot.slane %v409, %v607
        %v609 = vmul.f32 %v590, %v608
        %v610 = vmul.f32 %v592, %v608
        %v611 = vmul.f32 %v594, %v608
        %v612 = vmul.f32 %v596, %v608
        %v613 = vmul.f32 %v598, %v608
        %v614 = vmul.f32 %v600, %v608
        %v615 = vmul.f32 %v602, %v608
        %v616 = vmul.f32 %v604, %v608
        %v617 = vadd.f32 %v581, %v609
        %v618 = vadd.f32 %v582, %v610
        %v619 = vadd.f32 %v583, %v611
        %v620 = vadd.f32 %v584, %v612
        %v621 = vadd.f32 %v585, %v613
        %v622 = vadd.f32 %v586, %v614
        %v623 = vadd.f32 %v587, %v615
        %v624 = vadd.f32 %v588, %v616
        %s625 = scalar_lea.vmem [#allocation2], 48
        %v626 = vld [vmem:[%s625] ss:$2 sm:$0xff]
        %s627 = scalar_lea.vmem %s625, 48 [#allocation2]
        %v628 = vld [vmem:[%s627] ss:$2 sm:$0xff]
        %s629 = scalar_lea.vmem %s625, 96 [#allocation2]
        %v630 = vld [vmem:[%s629] ss:$2 sm:$0xff]
        %s631 = scalar_lea.vmem %s625, 144 [#allocation2]
        %v632 = vld [vmem:[%s631] ss:$2 sm:$0xff]
        %s633 = scalar_lea.vmem %s625, 192 [#allocation2]
        %v634 = vld [vmem:[%s633] ss:$2 sm:$0xff]
        %s635 = scalar_lea.vmem %s625, 240 [#allocation2]
        %v636 = vld [vmem:[%s635] ss:$2 sm:$0xff]
        %s637 = scalar_lea.vmem %s625, 288 [#allocation2]
        %v638 = vld [vmem:[%s637] ss:$2 sm:$0xff]
        %s639 = scalar_lea.vmem %s625, 336 [#allocation2]
        %v640 = vld [vmem:[%s639] ss:$2 sm:$0xff]
        %v641 = vlaneseq
        %v642 = vshrl.u32 %v641, 7
        %v643 = vsub.s32 6, %v642
        %v644 = vrot.slane %v409, %v643
        %v645 = vmul.f32 %v626, %v644
        %v646 = vmul.f32 %v628, %v644
        %v647 = vmul.f32 %v630, %v644
        %v648 = vmul.f32 %v632, %v644
        %v649 = vmul.f32 %v634, %v644
        %v650 = vmul.f32 %v636, %v644
        %v651 = vmul.f32 %v638, %v644
        %v652 = vmul.f32 %v640, %v644
        %v653 = vadd.f32 %v617, %v645
        %v654 = vadd.f32 %v618, %v646
        %v655 = vadd.f32 %v619, %v647
        %v656 = vadd.f32 %v620, %v648
        %v657 = vadd.f32 %v621, %v649
        %v658 = vadd.f32 %v622, %v650
        %v659 = vadd.f32 %v623, %v651
        %v660 = vadd.f32 %v624, %v652
        %s661 = scalar_lea.vmem %s625, 1 [#allocation2]
        %v662 = vld [vmem:[%s661] ss:$2 sm:$0xff]
        %s663 = scalar_lea.vmem %s625, 49 [#allocation2]
        %v664 = vld [vmem:[%s663] ss:$2 sm:$0xff]
        %s665 = scalar_lea.vmem %s625, 97 [#allocation2]
        %v666 = vld [vmem:[%s665] ss:$2 sm:$0xff]
        %s667 = scalar_lea.vmem %s625, 145 [#allocation2]
        %v668 = vld [vmem:[%s667] ss:$2 sm:$0xff]
        %s669 = scalar_lea.vmem %s625, 193 [#allocation2]
        %v670 = vld [vmem:[%s669] ss:$2 sm:$0xff]
        %s671 = scalar_lea.vmem %s625, 241 [#allocation2]
        %v672 = vld [vmem:[%s671] ss:$2 sm:$0xff]
        %s673 = scalar_lea.vmem %s625, 289 [#allocation2]
        %v674 = vld [vmem:[%s673] ss:$2 sm:$0xff]
        %s675 = scalar_lea.vmem %s625, 337 [#allocation2]
        %v676 = vld [vmem:[%s675] ss:$2 sm:$0xff]
        %v677 = vlaneseq
        %v678 = vshrl.u32 %v677, 7
        %v679 = vsub.s32 7, %v678
        %v680 = vrot.slane %v409, %v679
        %v681 = vmul.f32 %v662, %v680
        %v682 = vmul.f32 %v664, %v680
        %v683 = vmul.f32 %v666, %v680
        %v684 = vmul.f32 %v668, %v680
        %v685 = vmul.f32 %v670, %v680
        %v686 = vmul.f32 %v672, %v680
        %v687 = vmul.f32 %v674, %v680
        %v688 = vmul.f32 %v676, %v680
        %v689 = vadd.f32 %v653, %v681
        %v690 = vadd.f32 %v654, %v682
        %v691 = vadd.f32 %v655, %v683
        %v692 = vadd.f32 %v656, %v684
        %v693 = vadd.f32 %v657, %v685
        %v694 = vadd.f32 %v658, %v686
        %v695 = vadd.f32 %v659, %v687
        %v696 = vadd.f32 %v660, %v688
        %s697 = scalar_lea.vmem %s625, 2 [#allocation2]
        %v698 = vld [vmem:[%s697] ss:$2 sm:$0xff]
        %s699 = scalar_lea.vmem %s625, 50 [#allocation2]
        %v700 = vld [vmem:[%s699] ss:$2 sm:$0xff]
        %s701 = scalar_lea.vmem %s625, 98 [#allocation2]
        %v702 = vld [vmem:[%s701] ss:$2 sm:$0xff]
        %s703 = scalar_lea.vmem %s625, 146 [#allocation2]
        %v704 = vld [vmem:[%s703] ss:$2 sm:$0xff]
        %s705 = scalar_lea.vmem %s625, 194 [#allocation2]
        %v706 = vld [vmem:[%s705] ss:$2 sm:$0xff]
        %s707 = scalar_lea.vmem %s625, 242 [#allocation2]
        %v708 = vld [vmem:[%s707] ss:$2 sm:$0xff]
        %s709 = scalar_lea.vmem %s625, 290 [#allocation2]
        %v710 = vld [vmem:[%s709] ss:$2 sm:$0xff]
        %s711 = scalar_lea.vmem %s625, 338 [#allocation2]
        %v712 = vld [vmem:[%s711] ss:$2 sm:$0xff]
        %v713 = vlaneseq
        %v714 = vshrl.u32 %v713, 7
        %v715 = vsub.s32 0, %v714
        %v716 = vrot.slane %v410, %v715
        %v717 = vmul.f32 %v698, %v716
        %v718 = vmul.f32 %v700, %v716
        %v719 = vmul.f32 %v702, %v716
        %v720 = vmul.f32 %v704, %v716
        %v721 = vmul.f32 %v706, %v716
        %v722 = vmul.f32 %v708, %v716
        %v723 = vmul.f32 %v710, %v716
        %v724 = vmul.f32 %v712, %v716
        %v725 = vadd.f32 %v689, %v717
        %v726 = vadd.f32 %v690, %v718
        %v727 = vadd.f32 %v691, %v719
        %v728 = vadd.f32 %v692, %v720
        %v729 = vadd.f32 %v693, %v721
        %v730 = vadd.f32 %v694, %v722
        %v731 = vadd.f32 %v695, %v723
        %v732 = vadd.f32 %v696, %v724
        %v733 = vld [vmem:[%s2] sm:$0x1]
        %v735 = vlaneseq
        %v736 = vshrl.u32 %v735, 7
        %v737 = vsub.s32 0, %v736
        %v738 = vrot.slane %v733, %v737
        %v740 = vadd.f32 %v725, %v738
        %v741 = vadd.f32 %v726, %v738
        %v742 = vadd.f32 %v727, %v738
        %v743 = vadd.f32 %v728, %v738
        %v744 = vadd.f32 %v729, %v738
        %v745 = vadd.f32 %v730, %v738
        %v746 = vadd.f32 %v731, %v738
        %v747 = vadd.f32 %v732, %v738
        %v748 = vmax.f32 %v740, 0.0
        %v749 = vmax.f32 %v741, 0.0
        %v750 = vmax.f32 %v742, 0.0
        %v751 = vmax.f32 %v743, 0.0
        %v752 = vmax.f32 %v744, 0.0
        %v753 = vmax.f32 %v745, 0.0
        %v754 = vmax.f32 %v746, 0.0
        %v755 = vmax.f32 %v747, 0.0
        %v756 = vpack.c.bf16 %v749, %v748
        %v757 = vpack.c.bf16 %v751, %v750
        %v758 = vpack.c.bf16 %v753, %v752
        %v759 = vpack.c.bf16 %v755, %v754
        %v760 = vld [vmem:[#allocation8] sm:$0xf]
        %v761 = vld [vmem:[#allocation8 + $0x4] sm:$0xf]
        %v762 = vld [vmem:[#allocation8 + $0x8] sm:$0xf]
        %v763 = vld [vmem:[#allocation8 + $0xc] sm:$0xf]
        %v764 = vld [vmem:[#allocation8 + $0x10] sm:$0xf]
        %v765 = vld [vmem:[#allocation8 + $0x14] sm:$0xf]
        %v766 = vld [vmem:[#allocation8 + $0x18] sm:$0xf]
        %v767 = vld [vmem:[#allocation8 + $0x1c] sm:$0xf]
        %v768 = vld [vmem:[#allocation8 + $0x20] sm:$0xf]
        %v769 = vld [vmem:[#allocation8 + $0x24] sm:$0xf]
        %v770 = vld [vmem:[#allocation8 + $0x28] sm:$0xf]
        %v771 = vld [vmem:[#allocation8 + $0x2c] sm:$0xf]
        %v772 = vld [vmem:[#allocation8 + $0x30] sm:$0xf]
        %v773 = vld [vmem:[#allocation8 + $0x34] sm:$0xf]
        %v774 = vld [vmem:[#allocation8 + $0x38] sm:$0xf]
        %v775 = vld [vmem:[#allocation8 + $0x3c] sm:$0xf]
        %v776 = vld [vmem:[%s4] sm:$0x1]
        %v778 = vlaneseq
        %v779 = vshrl.u32 %v778, 7
        %v780 = vsub.s32 0, %v779
        %v781 = vrot.slane %v776, %v780
        %v799 = vunpack.c.l.b16 %v760
        %v800 = vunpack.c.l.b16 %v761
        %v801 = vunpack.c.l.b16 %v762
        %v802 = vunpack.c.l.b16 %v763
        %v803 = vunpack.c.l.b16 %v764
        %v804 = vunpack.c.l.b16 %v765
        %v805 = vunpack.c.l.b16 %v766
        %v806 = vunpack.c.l.b16 %v767
        %v807 = vunpack.c.l.b16 %v768
        %v808 = vunpack.c.l.b16 %v769
        %v809 = vunpack.c.l.b16 %v770
        %v810 = vunpack.c.l.b16 %v771
        %v811 = vunpack.c.l.b16 %v772
        %v812 = vunpack.c.l.b16 %v773
        %v813 = vunpack.c.l.b16 %v774
        %v814 = vunpack.c.l.b16 %v775
        %v815 = vpack.c.b16 %v800, %v799
        %v816 = vpack.c.b16 %v802, %v801
        %v817 = vpack.c.b16 %v804, %v803
        %v818 = vpack.c.b16 %v806, %v805
        %v819 = vpack.c.b16 %v808, %v807
        %v820 = vpack.c.b16 %v810, %v809
        %v821 = vpack.c.b16 %v812, %v811
        %v822 = vpack.c.b16 %v814, %v813
        %831 = vmatprep.subr.bf16.mxu0 0
        %832 = vmatpush1.bf16.msra.mxu0 %v822
        %833 = vmatprep.subr.bf16.mxu0 0
        %834 = vmatpush1.bf16.msra.mxu0 %v821
        %835 = vmatprep.subr.bf16.mxu0 0
        %836 = vmatpush1.bf16.msra.mxu0 %v820
        %837 = vmatprep.subr.bf16.mxu0 0
        %838 = vmatpush1.bf16.msra.mxu0 %v819
        %839 = vmatprep.subr.bf16.mxu0 0
        %840 = vmatpush1.bf16.msra.mxu0 %v818
        %841 = vmatprep.subr.bf16.mxu0 0
        %842 = vmatpush1.bf16.msra.mxu0 %v817
        %843 = vmatprep.subr.bf16.mxu0 0
        %844 = vmatpush1.bf16.msra.mxu0 %v816
        %845 = vmatprep.subr.bf16.mxu0 0
        %846 = vmatpush1.bf16.msra.mxu0 %v815
        %847 = vmatprep.subr.bf16.mxu0 0
        %848 = vmatpush2.bf16.msra.mxu0 0
        %849 = vmatprep.subr.bf16.mxu0 0
        %850 = vmatpush2.bf16.msra.mxu0 0
        %851 = vmatprep.subr.bf16.mxu0 0
        %852 = vmatpush2.bf16.msra.mxu0 0
        %853 = vmatprep.subr.bf16.mxu0 0
        %854 = vmatpush2.bf16.msra.mxu0 0
        %855 = vmatprep.subr.bf16.mxu0 0
        %856 = vmatpush2.bf16.msra.mxu0 0
        %857 = vmatprep.subr.bf16.mxu0 0
        %858 = vmatpush2.bf16.msra.mxu0 0
        %859 = vmatprep.subr.bf16.mxu0 0
        %860 = vmatpush2.bf16.msra.mxu0 0
        %861 = vmatprep.subr.bf16.mxu0 0
        %862 = vmatpush2.bf16.msra.mxu0 0
        %863 = vmatprep.mubr.bf16.mxu0 0
        %864 = vmatmul.mubr.bf16.gmra.mxu0 %v756
        %v865 = vpop.f32.mrf.mxu0
        %v866 = vadd.f32 %v781, %v865
        %v867 = vpop.f32.mrf.mxu0
        %v868 = vpop.f32.mrf.mxu0
        %v869 = vadd.f32 %v781, %v868
        %v870 = vpop.f32.mrf.mxu0
        %871 = vmatprep.mubr.bf16.mxu0 0
        %872 = vmatmul.mubr.bf16.gmra.mxu0 %v757
        %v873 = vpop.f32.mrf.mxu0
        %v874 = vadd.f32 %v781, %v873
        %v875 = vpop.f32.mrf.mxu0
        %v876 = vpop.f32.mrf.mxu0
        %v877 = vadd.f32 %v781, %v876
        %v878 = vpop.f32.mrf.mxu0
        %879 = vmatprep.mubr.bf16.mxu0 0
        %880 = vmatmul.mubr.bf16.gmra.mxu0 %v758
        %v881 = vpop.f32.mrf.mxu0
        %v882 = vadd.f32 %v781, %v881
        %v883 = vpop.f32.mrf.mxu0
        %v884 = vpop.f32.mrf.mxu0
        %v885 = vadd.f32 %v781, %v884
        %v886 = vpop.f32.mrf.mxu0
        %887 = vmatprep.mubr.bf16.mxu0 0
        %888 = vmatmul.mubr.bf16.gmra.mxu0 %v759
        %v889 = vpop.f32.mrf.mxu0
        %v890 = vadd.f32 %v781, %v889
        %v891 = vpop.f32.mrf.mxu0
        %v892 = vpop.f32.mrf.mxu0
        %v893 = vadd.f32 %v781, %v892
        %v894 = vpop.f32.mrf.mxu0
        %895 = vdwg.mxu0
        %v896 = vmax.f32 %v866, 0.0
        %v897 = vmax.f32 %v869, 0.0
        %v898 = vmax.f32 %v874, 0.0
        %v899 = vmax.f32 %v877, 0.0
        %v900 = vmax.f32 %v882, 0.0
        %v901 = vmax.f32 %v885, 0.0
        %v902 = vmax.f32 %v890, 0.0
        %v903 = vmax.f32 %v893, 0.0
        %v904 = vpack.c.bf16 %v896, %v896
        %v905 = vpack.c.bf16 %v897, %v897
        %v906 = vpack.c.bf16 %v898, %v898
        %v907 = vpack.c.bf16 %v899, %v899
        %v908 = vpack.c.bf16 %v900, %v900
        %v909 = vpack.c.bf16 %v901, %v901
        %v910 = vpack.c.bf16 %v902, %v902
        %v911 = vpack.c.bf16 %v903, %v903
        %912 = vst [vmem:[%s271] sm:$0xf] %v904
        %913 = vst [vmem:[%s271 + $0x4] sm:$0xf] %v905
        %914 = vst [vmem:[%s271 + $0x8] sm:$0xf] %v906
        %915 = vst [vmem:[%s271 + $0xc] sm:$0xf] %v907
        %916 = vst [vmem:[%s271 + $0x10] sm:$0xf] %v908
        %917 = vst [vmem:[%s271 + $0x14] sm:$0xf] %v909
        %918 = vst [vmem:[%s271 + $0x18] sm:$0xf] %v910
        %919 = vst [vmem:[%s271 + $0x1c] sm:$0xf] %v911
        %s920 = sand.u32 %s141, 1
        %s921 = scalar_lea.sflag [#allocation5], %s920
        %s922 = sand.u32 %s141, 1
        %s923 = smul.addr %s922, 32
        %s924 = scalar_lea.vmem [#allocation9], %s923
        // Predicated region
        $region53: #{tpu_custom_call.1} parent=39 // pred_check
          %p925 = pneg %p151
        $region54: #{tpu_custom_call.1} parent=39 // pred_check_branch
          %927 = sbr.rel (%p925) target = $region56
        $region55: #{tpu_custom_call.1} parent=39 // pred_region
          %s929 = ssub.s32 512, 512
          %930 = vsyncadd %s921, %s929
          %s931 = smul.addr %s23, 8
          %s932 = smul.addr %s931, 64
          %s933 = scalar_lea.hbm %s5, %s932
          %s934 = sshll.u32 %s924, 4
          %s935 = int_to_ptr.vmem [resolvable:$true] %s934
          %940 = dma.vmem_to_hbm [thread:$0]  %s935, 512, %s933, %s921, 64, 64, 4
        $region56: #{tpu_custom_call.1} parent=39 // pred_fallthru
          _
      $region40: #{tpu_custom_call.1} parent=5 // pred_fallthru
        _
      %p941 = scmp.le.s32.totalorder 2, %s18
      // Predicated region
      $region57: #{tpu_custom_call.1} parent=5 // pred_check
        %p942 = pneg %p941
      $region58: #{tpu_custom_call.1} parent=5 // pred_check_branch
        %944 = sbr.rel (%p942) target = $region60
      $region59: #{tpu_custom_call.1} parent=5 // pred_region
        %s945 = ssub.s32 %s18, 2
        // Predicated region
        $region61: #{tpu_custom_call.1} parent=59 // pred_check
          %p946 = pneg %p157
        $region62: #{tpu_custom_call.1} parent=59 // pred_check_branch
          %948 = sbr.rel (%p946) target = $region64
        $region63: #{tpu_custom_call.1} parent=59 // pred_region
          %s949 = sand.u32 %s142, 1
          %s950 = scalar_lea.sflag [#allocation5], %s949
          %s951 = sand.u32 %s142, 1
          %s952 = smul.addr %s951, 32
          %s953 = scalar_lea.vmem [#allocation9], %s952
          %954 = dma.done %s950, 512
        $region64: #{tpu_custom_call.1} parent=59 // pred_fallthru
          _
      $region60: #{tpu_custom_call.1} parent=5 // pred_fallthru
        _
    $region6: #{tpu_custom_call.1} parent=1 // loop_footer
      %s22 = sadd.s32 1, %s18
    $region7: #{tpu_custom_call.1} parent=1 // loop_footer_branch
      %17 = sbr.rel target = $region3
    $region8: #{tpu_custom_call.1} parent=1 // loop_exit
      _
    %955 = vsyncpa [#allocation4], 1
    %s956 = scalar_lea.sflag [#allocation4], 1
    %957 = vsyncpa %s956, 1
    %958 = vsyncpa [#allocation7], 1
    %959 = vsyncpa [#allocation5], 1
    %s960 = scalar_lea.sflag [#allocation5], 1
    %961 = vsyncpa %s960, 1

</llo_original>
